<compile_context>
chip_gen: v6e
topology: v6e:2x2x1
jax: 0.10.0
libtpu: 0.0.40
codegen_flags: <defaults>
</compile_context>

<pallas_src>
import functools

import jax
import jax.numpy as jnp
from jax.experimental import pallas as pl
from jax.experimental.pallas import tpu as pltpu


def _round_up(x, m):
    return ((x + m - 1) // m) * m


def _vmem_budget_and_limit():
    """(planning budget bytes, vmem_limit_bytes) per TPU generation."""
    kind = ""
    try:
        kind = jax.devices()[0].device_kind.lower()
    except Exception:
        pass
    if "v7" in kind or "7x" in kind:
        # v7x: only 64 MiB VMEM per TensorCore; W is resident in BOTH cores.
        return 36 * 1024 * 1024, 44 * 1024 * 1024
    if "v2" in kind or "v3" in kind:
        # Older chips: small VMEM, stay near defaults.
        return 12 * 1024 * 1024, 16 * 1024 * 1024
    # v4 / v5e / v6e: 128 MiB physical VMEM; raise the default scoped limit.
    return 48 * 1024 * 1024, 64 * 1024 * 1024


def _classifier_kernel(x_ref, w_ref, b_ref, o_ref):
    # x_ref: (TM, H)  w_ref: (H, L_pad)  b_ref: (1, L_pad)  o_ref: (TM, L_pad)
    y = jnp.dot(x_ref[...], w_ref[...], preferred_element_type=jnp.float32)
    y = y + b_ref[...].astype(jnp.float32)
    o_ref[...] = y.astype(o_ref.dtype)


def prepare_classifier_params(weight, bias):
    """One-time (parameter-load-time) transpose + lane-pad of nn.Linear params.

    weight: (num_labels, hidden)  -- PyTorch nn.Linear layout
    bias:   (num_labels,)
    returns (w_t, b2d): (hidden, L_pad), (1, L_pad), L_pad = round_up(L, 128).
    """
    L, H = weight.shape
    L_pad = _round_up(L, 128)
    w_t = jnp.zeros((H, L_pad), dtype=weight.dtype).at[:, :L].set(weight.T)
    b2d = jnp.zeros((1, L_pad), dtype=bias.dtype).at[:, :L].set(
        bias.reshape(1, L))
    return w_t, b2d


def classifier_head(hidden_states, w_t, b2d, num_labels, *, force_pallas=False):
    """hidden_states: (B, S, H); w_t: (H, L_pad); b2d: (1, L_pad)."""
    B, S, H = hidden_states.shape
    L = num_labels
    L_pad = w_t.shape[1]
    M = B * S
    x_dtype = hidden_states.dtype

    # Tiny-problem fallback: ~us-scale Pallas call overhead dwarfs the matmul.
    if not force_pallas and M * H < (1 << 16):
        out = hidden_states.astype(jnp.float32) @ w_t.astype(jnp.float32)
        out = out + b2d.astype(jnp.float32)
        return out[..., :L].astype(x_dtype)

    x2d = hidden_states.reshape(M, H)

    x_isz = jnp.dtype(x_dtype).itemsize
    w_isz = jnp.dtype(w_t.dtype).itemsize
    # Sublane tile depends on element width: 8 (f32) / 16 (bf16) / 32 (int8).
    sublane = {4: 8, 2: 16, 1: 32}.get(x_isz, 8)

    budget, vmem_limit = _vmem_budget_and_limit()
    # Pallas double-buffers every input/output by default: count BOTH buffers
    # of the "resident" W / b as well as of the streamed x / out tiles.
    fixed = 2 * (H * L_pad + L_pad) * w_isz
    per_row = 2 * (H + L_pad) * x_isz
    tm = (budget - fixed) // per_row if budget > fixed else sublane
    tm = max(sublane, min(1024, tm))
    # Keep >= ~4 grid steps so both v7x TensorCores get work and the x-tile
    # pipeline actually overlaps DMA with compute.
    tm = min(tm, max(sublane, _round_up(pl.cdiv(M, 4), sublane)))
    # A tile larger than the whole (sublane-rounded) problem is pointless.
    tm = min(tm, _round_up(M, sublane))
    tm = max(sublane, (tm // sublane) * sublane)

    # Ragged last tile handled by Pallas (no jnp.pad copy of x through HBM).
    grid = (pl.cdiv(M, tm),)

    cost = pl.CostEstimate(
        flops=2 * M * H * L_pad,
        transcendentals=0,
        bytes_accessed=(x_isz * (M * H + M * L_pad)
                        + w_isz * (H * L_pad + L_pad)),
    )

    out = pl.pallas_call(
        _classifier_kernel,
        out_shape=jax.ShapeDtypeStruct((M, L_pad), x_dtype),
        grid_spec=pltpu.PrefetchScalarGridSpec(
            num_scalar_prefetch=0,
            grid=grid,
            in_specs=[
                pl.BlockSpec((tm, H), lambda i: (i, 0)),      # x: streamed over M
                pl.BlockSpec((H, L_pad), lambda i: (0, 0)),   # W: resident
                pl.BlockSpec((1, L_pad), lambda i: (0, 0)),   # b: resident
            ],
            out_specs=pl.BlockSpec((tm, L_pad), lambda i: (i, 0)),
        ),
        compiler_params=pltpu.CompilerParams(
            dimension_semantics=("parallel",),  # v7x: shard M tiles over 2 TCs
            vmem_limit_bytes=vmem_limit,
        ),
        cost_estimate=cost,
    )(x2d, w_t, b2d)

    return out[:, :L].reshape(B, S, L)


def sequence_classifier_forward(hidden_states, weight, bias, *,
                                force_pallas=False):
    """Convenience wrapper taking raw nn.Linear params (prep not hoisted)."""
    w_t, b2d = prepare_classifier_params(weight, bias)
    return classifier_head(hidden_states, w_t, b2d, weight.shape[0],
                           force_pallas=force_pallas)


if __name__ == "__main__":
    # Small shapes consistent with the module's forward:
    #   hidden_states: (batch=2, seq=8, hidden=32), num_labels=4
    batch, seq, hidden_size, num_labels = 2, 8, 32, 4

    key = jax.random.PRNGKey(0)
    k_x, k_w, k_b, k_x2 = jax.random.split(key, 4)

    hidden_states = jax.random.normal(k_x, (batch, seq, hidden_size),
                                      dtype=jnp.float32)
    bound = 1.0 / jnp.sqrt(hidden_size)
    weight = jax.random.uniform(k_w, (num_labels, hidden_size),
                                minval=-bound, maxval=bound, dtype=jnp.float32)
    bias = jax.random.uniform(k_b, (num_labels,),
                              minval=-bound, maxval=bound, dtype=jnp.float32)

    # Hoist weight transpose / lane-pad out of the per-call path (done once).
    w_t, b2d = prepare_classifier_params(weight, bias)

    fwd = jax.jit(functools.partial(classifier_head, num_labels=num_labels,
                                    force_pallas=True))

    # Case 1: M divides the tile exactly.
    out = fwd(hidden_states, w_t, b2d)
    jax.block_until_ready(out)
    ref = hidden_states @ weight.T + bias
    assert out.shape == (batch, seq, num_labels)
    assert jnp.allclose(out, ref, atol=1e-5, rtol=1e-5)

    # Case 2: ragged last tile (M = 2*13 = 26) to validate removal of the
    # XLA-side x padding copy.
    hs2 = jax.random.normal(k_x2, (2, 13, hidden_size), dtype=jnp.float32)
    out2 = fwd(hs2, w_t, b2d)
    jax.block_until_ready(out2)
    ref2 = hs2 @ weight.T + bias
    assert out2.shape == (2, 13, num_labels)
    assert jnp.allclose(out2, ref2, atol=1e-5, rtol=1e-5)

    print("KERNEL_OK")
</pallas_src>

<mosaic_0001>
module attributes {stable_mosaic.version = 11 : i64} {
  func.func @_classifier_kernel(%arg0: i32, %arg1: memref<8x32xf32, #tpu.memory_space<vmem>>, %arg2: memref<32x128xf32, #tpu.memory_space<vmem>>, %arg3: memref<1x128xf32, #tpu.memory_space<vmem>>, %arg4: memref<8x128xf32, #tpu.memory_space<vmem>>) attributes {dimension_semantics = [#tpu.dimension_semantics<parallel>], iteration_bounds = array<i64: 2>, scalar_prefetch = 0 : i64, scratch_operands = 0 : i64, tpu.core_type = #tpu.core_type<tc>, window_params = [{transform_indices = @transform_0, window_bounds = array<i64: 8, 32>}, {pipeline_mode = #tpu.pipeline_mode<synchronous>, transform_indices = @transform_1, window_bounds = array<i64: 32, 128>}, {pipeline_mode = #tpu.pipeline_mode<synchronous>, transform_indices = @transform_2, window_bounds = array<i64: 1, 128>}, {transform_indices = @transform_3, window_bounds = array<i64: 8, 128>}]} {
    %c0 = arith.constant 0 : index
    %c0_0 = arith.constant 0 : index
    %0 = vector.load %arg1[%c0, %c0_0] : memref<8x32xf32, #tpu.memory_space<vmem>>, vector<8x32xf32>
    %c0_1 = arith.constant 0 : index
    %c0_2 = arith.constant 0 : index
    %1 = vector.load %arg2[%c0_1, %c0_2] : memref<32x128xf32, #tpu.memory_space<vmem>>, vector<32x128xf32>
    %cst = arith.constant dense<0.000000e+00> : vector<8x128xf32>
    %2 = tpu.matmul %0, %1, %cst {dimension_numbers = #tpu.dot_dimension_numbers<[1], [0], [0], [1], [0, 0, 1, 1], [], []>} : vector<8x32xf32>, vector<32x128xf32>, vector<8x128xf32> -> vector<8x128xf32>
    %c0_3 = arith.constant 0 : index
    %c0_4 = arith.constant 0 : index
    %3 = vector.load %arg3[%c0_3, %c0_4] : memref<1x128xf32, #tpu.memory_space<vmem>>, vector<1x128xf32>
    %4 = vector.broadcast %3 : vector<1x128xf32> to vector<8x128xf32>
    %5 = arith.addf %2, %4 : vector<8x128xf32>
    %c0_5 = arith.constant 0 : index
    %c0_6 = arith.constant 0 : index
    %6 = vector.load %arg4[%c0_5, %c0_6] : memref<8x128xf32, #tpu.memory_space<vmem>>, vector<8x128xf32>
    tpu.vector_store %arg4[%c0_5, %c0_6], %5 {strides = array<i32>} : memref<8x128xf32, #tpu.memory_space<vmem>>, vector<8x128xf32>,
    return
  }
  func.func @transform_0(%arg0: i32) -> (i32, i32) {
    %c0_i32 = arith.constant 0 : i32
    %c0_i32_0 = arith.constant 0 : i32
    return %arg0, %c0_i32 : i32, i32
  }
  func.func @transform_1(%arg0: i32) -> (i32, i32) {
    %c0_i32 = arith.constant 0 : i32
    %c0_i32_0 = arith.constant 0 : i32
    %c0_i32_1 = arith.constant 0 : i32
    return %c0_i32, %c0_i32_0 : i32, i32
  }
  func.func @transform_2(%arg0: i32) -> (i32, i32) {
    %c0_i32 = arith.constant 0 : i32
    %c0_i32_0 = arith.constant 0 : i32
    %c0_i32_1 = arith.constant 0 : i32
    return %c0_i32, %c0_i32_0 : i32, i32
  }
  func.func @transform_3(%arg0: i32) -> (i32, i32) {
    %c0_i32 = arith.constant 0 : i32
    %c0_i32_0 = arith.constant 0 : i32
    return %arg0, %c0_i32 : i32, i32
  }
}

</mosaic_0001>

<llo_original>
// kernel: classifier_head.1
$region0: #{classifier_head.1}
  #allocation0 [shape = 'u32[]', space=smem, size = 0x4, offset = 0x4, fixed_abs, tag = 'smem constant byte address 0x4 - core index']
  #allocation1 [shape = 'u32[144,128]{1,0:T(1,128)}', space=vmem, size = 0x12000, scoped, tag = 'internal scratch']
  %s0 = inlined_call_operand.hbm [shape: f32[16,32], index: 0, kind: input, shape index: {}]
  %s1 = inlined_call_operand.hbm [shape: f32[32,128], index: 1, kind: input, shape index: {}]
  %s2 = inlined_call_operand.vmem [shape: f32[1,128], index: 2, kind: input, shape index: {}]
  %s3 = inlined_call_operand.vmem [shape: f32[16,128], index: 3, kind: output, shape index: {}]
  %s4 = sld [smem:[#allocation0]]
  $region53: #{classifier_head.1} parent=0
    _
  %s6 = ssub.s32 1, %s4
  %s7 = scalar_select 0, %s6, %s4
  $region1: #{classifier_head.1} parent=0
    #allocation2 [shape = 'u8[8192]{0}', space=vmem, size = 0x2000, scoped, tag = 'input window, operand 0']
    #allocation3 [shape = 's32[2]{0}', space=sflag, size = 0x8, scoped, tag = 'scoped memory for classifier_head.1']
    #allocation4 [shape = 'u8[16384]{0}', space=vmem, size = 0x4000, scoped, tag = 'input window, operand 1, single buffered']
    #allocation5 [shape = 's32[1]{0}', space=sflag, size = 0x4, scoped, tag = 'scoped memory for classifier_head.1']
    %8 = vsyncpa [#allocation3], 0
    %s9 = scalar_lea.sflag [#allocation3], 1
    %10 = vsyncpa %s9, 0
    %11 = vsyncpa [#allocation5], 0
    loop: start=0, step=1, limit=4
    $region2: #{classifier_head.1} parent=1 // loop_pre_header
      _
    $region3: #{classifier_head.1} parent=1 // loop_header
      %s13 = sphi 0, %s17
      %p14 = scmp.ge.s32.totalorder %s13, 4
      %s23 = sphi 0, %s25
      %s26 = sphi 0, %s23
      %s27 = sphi 0, %s26
      %s43 = sphi 0, %s27
      %s47 = sphi 0, %s47
      %s49 = sphi 0, %s47
      %s50 = sphi 0, %s49
      %s64 = sphi 0, %s50
      %s68 = sphi 0, %s68
      %s70 = sphi 0, %s68
      %s71 = sphi 0, %s70
      %s85 = sphi 0, %s71
      %s91 = sphi 0, %s93
      %s94 = sphi 0, %s91
      %s95 = sphi 0, %s94
      %s111 = sphi 0, %s95
    $region4: #{classifier_head.1} parent=1 // loop_header_branch
      %16 = sbr.rel (%p14) target = $region8
    $region5: #{classifier_head.1} parent=1 // loop_body
      %s18 = ssub.s32 %s13, 1
      %s19 = ssub.s32 %s13, 2
      %s20 = sadd.s32 %s13, 1
      %s21 = ssub.s32 %s13, %s20
      %p22 = scmp.eq.s32.totalorder %s21, 0
      %s24 = sadd.s32 %s23, 1
      %s25 = scalar_select %p22, %s23, %s24
      %p28 = pneg %p22
      %p29 = scmp.eq.s32.totalorder %s13, 1
      %p30 = por %p28, %p29
      %p31 = scmp.ne.s32.totalorder %s23, %s26
      %p32 = scmp.eq.s32.totalorder %s13, 0
      %p33 = por %p31, %p32
      %p34 = scmp.ne.s32.totalorder %s23, %s26
      %p35 = scmp.eq.s32.totalorder %s18, 1
      %p36 = por %p34, %p35
      %p37 = scmp.ne.s32.totalorder %s26, %s27
      %p38 = scmp.eq.s32.totalorder %s18, 0
      %p39 = por %p37, %p38
      %p40 = scmp.ne.s32.totalorder %s26, %s27
      %p41 = scmp.eq.s32.totalorder %s19, 1
      %p42 = por %p40, %p41
      %p44 = scmp.ne.s32.totalorder %s27, %s43
      %p45 = scmp.eq.s32.totalorder %s19, 0
      %p46 = por %p44, %p45
      %s48 = sadd.s32 %s47, 1
      %p51 = scmp.eq.s32.totalorder %s13, 1
      %p52 = scmp.ne.s32.totalorder %s47, %s49
      %p53 = scmp.eq.s32.totalorder %s13, 0
      %p54 = por %p52, %p53
      %p55 = scmp.ne.s32.totalorder %s47, %s49
      %p56 = scmp.eq.s32.totalorder %s18, 1
      %p57 = por %p55, %p56
      %p58 = scmp.ne.s32.totalorder %s49, %s50
      %p59 = scmp.eq.s32.totalorder %s18, 0
      %p60 = por %p58, %p59
      %p61 = scmp.ne.s32.totalorder %s49, %s50
      %p62 = scmp.eq.s32.totalorder %s19, 1
      %p63 = por %p61, %p62
      %p65 = scmp.ne.s32.totalorder %s50, %s64
      %p66 = scmp.eq.s32.totalorder %s19, 0
      %p67 = por %p65, %p66
      %s69 = sadd.s32 %s68, 1
      %p72 = scmp.eq.s32.totalorder %s13, 1
      %p73 = scmp.ne.s32.totalorder %s68, %s70
      %p74 = scmp.eq.s32.totalorder %s13, 0
      %p75 = por %p73, %p74
      %p76 = scmp.ne.s32.totalorder %s68, %s70
      %p77 = scmp.eq.s32.totalorder %s18, 1
      %p78 = por %p76, %p77
      %p79 = scmp.ne.s32.totalorder %s70, %s71
      %p80 = scmp.eq.s32.totalorder %s18, 0
      %p81 = por %p79, %p80
      %p82 = scmp.ne.s32.totalorder %s70, %s71
      %p83 = scmp.eq.s32.totalorder %s19, 1
      %p84 = por %p82, %p83
      %p86 = scmp.ne.s32.totalorder %s71, %s85
      %p87 = scmp.eq.s32.totalorder %s19, 0
      %p88 = por %p86, %p87
      %s89 = ssub.s32 %s13, %s20
      %p90 = scmp.eq.s32.totalorder %s89, 0
      %s92 = sadd.s32 %s91, 1
      %s93 = scalar_select %p90, %s91, %s92
      %p96 = pneg %p90
      %p97 = scmp.eq.s32.totalorder %s13, 1
      %p98 = por %p96, %p97
      %p99 = scmp.ne.s32.totalorder %s91, %s94
      %p100 = scmp.eq.s32.totalorder %s13, 0
      %p101 = por %p99, %p100
      %p102 = scmp.ne.s32.totalorder %s91, %s94
      %p103 = scmp.eq.s32.totalorder %s18, 1
      %p104 = por %p102, %p103
      %p105 = scmp.ne.s32.totalorder %s94, %s95
      %p106 = scmp.eq.s32.totalorder %s18, 0
      %p107 = por %p105, %p106
      %p108 = scmp.ne.s32.totalorder %s94, %s95
      %p109 = scmp.eq.s32.totalorder %s19, 1
      %p110 = por %p108, %p109
      %p112 = scmp.ne.s32.totalorder %s95, %s111
      %p113 = scmp.eq.s32.totalorder %s19, 0
      %p114 = por %p112, %p113
      %p115 = scmp.le.s32.totalorder 1, %s13
      %p116 = scmp.lt.s32.totalorder %s13, 3
      %p117 = pnand %p115, %p116
      %p118 = pneg %p117
      // Predicated region
      $region9: #{classifier_head.1} parent=5 // pred_check
        _
      $region10: #{classifier_head.1} parent=5 // pred_check_branch
        %120 = sbr.rel (%p117) target = $region12
      $region11: #{classifier_head.1} parent=5 // pred_region
        %s121 = ssub.s32 %s13, 1
        // Predicated region
        $region13: #{classifier_head.1} parent=11 // pred_check
          %p122 = pneg %p60
        $region14: #{classifier_head.1} parent=11 // pred_check_branch
          %124 = sbr.rel (%p122) target = $region16
        $region15: #{classifier_head.1} parent=11 // pred_region
          %s126 = ssub.s32 512, 512
          %127 = vsyncadd [#allocation5], %s126
          %s128 = sshll.u32 [#allocation4], 4
          %s129 = int_to_ptr.vmem [resolvable:$true] %s128
          %134 = dma.hbm_to_vmem [thread:$0]  %s1, 512, %s129, [#allocation5], 128, 128, 8
        $region16: #{classifier_head.1} parent=11 // pred_fallthru
          _
        // Predicated region
        $region17: #{classifier_head.1} parent=11 // pred_check
          %p135 = pneg %p81
        $region18: #{classifier_head.1} parent=11 // pred_check_branch
          %137 = sbr.rel (%p135) target = $region20
        $region19: #{classifier_head.1} parent=11 // pred_region
          _
        $region20: #{classifier_head.1} parent=11 // pred_fallthru
          _
      $region12: #{classifier_head.1} parent=5 // pred_fallthru
        _
      %p138 = scmp.lt.s32.totalorder %s13, 2
      // Predicated region
      $region21: #{classifier_head.1} parent=5 // pred_check
        %p139 = pneg %p138
      $region22: #{classifier_head.1} parent=5 // pred_check_branch
        %141 = sbr.rel (%p139) target = $region24
      $region23: #{classifier_head.1} parent=5 // pred_region
        // Predicated region
        $region25: #{classifier_head.1} parent=23 // pred_check
          %p142 = pneg %p33
        $region26: #{classifier_head.1} parent=23 // pred_check_branch
          %144 = sbr.rel (%p142) target = $region28
        $region27: #{classifier_head.1} parent=23 // pred_region
          %s145 = sand.u32 %s23, 1
          %s146 = scalar_lea.sflag [#allocation3], %s145
          %s147 = sand.u32 %s23, 1
          %s148 = smul.addr %s147, 8
          %s149 = scalar_lea.vmem [#allocation2], %s148
          %s151 = ssub.s32 128, 128
          %152 = vsyncadd %s146, %s151
          %s153 = smul.addr %s13, 128
          %s154 = scalar_lea.hbm %s0, %s153
          %s156 = sshll.u32 %s149, 4
          %s157 = int_to_ptr.vmem [resolvable:$true] %s156
          %159 = dma.hbm_to_vmem [thread:$0]  %s154, 128, %s157, %s146
        $region28: #{classifier_head.1} parent=23 // pred_fallthru
          _
      $region24: #{classifier_head.1} parent=5 // pred_fallthru
        _
      %p160 = scmp.le.s32.totalorder 1, %s13
      %p161 = scmp.lt.s32.totalorder %s13, 3
      %p162 = pnand %p160, %p161
      %p163 = pneg %p162
      // Predicated region
      $region29: #{classifier_head.1} parent=5 // pred_check
        _
      $region30: #{classifier_head.1} parent=5 // pred_check_branch
        %165 = sbr.rel (%p162) target = $region32
      $region31: #{classifier_head.1} parent=5 // pred_region
        %s166 = ssub.s32 %s13, 1
        %s167 = sand.u32 %s26, 1
        %s168 = scalar_lea.sflag [#allocation3], %s167
        %s169 = sand.u32 %s26, 1
        %s170 = smul.addr %s169, 8
        %s171 = scalar_lea.vmem [#allocation2], %s170
        // Predicated region
        $region33: #{classifier_head.1} parent=31 // pred_check
          %p172 = pneg %p39
        $region34: #{classifier_head.1} parent=31 // pred_check_branch
          %174 = sbr.rel (%p172) target = $region36
        $region35: #{classifier_head.1} parent=31 // pred_region
          %175 = dma.done %s168, 128
        $region36: #{classifier_head.1} parent=31 // pred_fallthru
          _
        // Predicated region
        $region37: #{classifier_head.1} parent=31 // pred_check
          %p176 = pneg %p60
        $region38: #{classifier_head.1} parent=31 // pred_check_branch
          %178 = sbr.rel (%p176) target = $region40
        $region39: #{classifier_head.1} parent=31 // pred_region
          %179 = dma.done [#allocation5], 512
        $region40: #{classifier_head.1} parent=31 // pred_fallthru
          _
        %s180 = sand.u32 %s26, 1
        %s181 = scalar_lea.sflag [#allocation3], %s180
        %s182 = sand.u32 %s26, 1
        %s183 = smul.addr %s182, 8
        %s184 = scalar_lea.vmem [#allocation2], %s183
        %p185 = pneg %p39
        %p186 = pneg %p36
        %p187 = pneg %p60
        %p188 = pneg %p57
        %p189 = pneg %p81
        %p190 = pneg %p78
        %p191 = pneg %p107
        %p192 = pneg %p104
        %p193 = scmp.lt.s32.totalorder %s18, 1
        %s194 = scalar_select %p193, %s18, 1
        %s195 = smul.addr %s194, 8
        %s196 = scalar_lea.vmem %s3, %s195
        %p197 = scmp.lt.s32.totalorder %s18, 1
        %s198 = scalar_select %p197, %s18, 1
        %s199 = smul.addr %s198, 8
        %s200 = scalar_lea.vmem %s3, %s199
        %v201 = vld [vmem:[%s171] sm:$0xff]
        %v202 = vld [vmem:[#allocation4] sm:$0xff]
        %v203 = vld [vmem:[#allocation4 + $0x8] sm:$0xff]
        %v204 = vld [vmem:[#allocation4 + $0x10] sm:$0xff]
        %v205 = vld [vmem:[#allocation4 + $0x18] sm:$0xff]
        %v206 = vld [vmem:[%s2] sm:$0x1]
        %v208 = vlaneseq
        %v209 = vshrl.u32 %v208, 7
        %v210 = vsub.s32 0, %v209
        %v211 = vrot.slane %v206, %v210
        %vm213 = vcmask 261120
        %v215 = vsel %vm213, %v201, 0
        %217 = vmatprep.subr.mxu0 0.0
        %218 = vmatpush1.msra.mxu0 0.0
        %219 = vmatprep.subr.mxu0 0.0
        %220 = vmatpush1.msra.mxu0 0.0
        %221 = vmatprep.subr.mxu0 0.0
        %222 = vmatpush1.msra.mxu0 0.0
        %223 = vmatprep.subr.mxu0 0.0
        %224 = vmatpush1.msra.mxu0 0.0
        %225 = vmatprep.subr.mxu0 0.0
        %226 = vmatpush1.msra.mxu0 0.0
        %227 = vmatprep.subr.mxu0 0.0
        %228 = vmatpush1.msra.mxu0 0.0
        %229 = vmatprep.subr.mxu0 0.0
        %230 = vmatpush1.msra.mxu0 0.0
        %231 = vmatprep.subr.mxu0 0.0
        %232 = vmatpush1.msra.mxu0 0.0
        %233 = vmatprep.subr.mxu0 0.0
        %234 = vmatpush1.msra.mxu0 0.0
        %235 = vmatprep.subr.mxu0 0.0
        %236 = vmatpush1.msra.mxu0 0.0
        %237 = vmatprep.subr.mxu0 0.0
        %238 = vmatpush1.msra.mxu0 0.0
        %239 = vmatprep.subr.mxu0 0.0
        %240 = vmatpush1.msra.mxu0 0.0
        %241 = vmatprep.subr.mxu0 0.0
        %242 = vmatpush1.msra.mxu0 %v205
        %243 = vmatprep.subr.mxu0 0.0
        %244 = vmatpush1.msra.mxu0 %v204
        %245 = vmatprep.subr.mxu0 0.0
        %246 = vmatpush1.msra.mxu0 %v203
        %247 = vmatprep.subr.mxu0 0.0
        %248 = vmatpush1.msra.mxu0 %v202
        %249 = vmatprep.subr.mxu0 0.0
        %250 = vmatpush2.msra.mxu0 0.0
        %251 = vmatprep.subr.mxu0 0.0
        %252 = vmatpush2.msra.mxu0 0.0
        %253 = vmatprep.subr.mxu0 0.0
        %254 = vmatpush2.msra.mxu0 0.0
        %255 = vmatprep.subr.mxu0 0.0
        %256 = vmatpush2.msra.mxu0 0.0
        %257 = vmatprep.subr.mxu0 0.0
        %258 = vmatpush2.msra.mxu0 0.0
        %259 = vmatprep.subr.mxu0 0.0
        %260 = vmatpush2.msra.mxu0 0.0
        %261 = vmatprep.subr.mxu0 0.0
        %262 = vmatpush2.msra.mxu0 0.0
        %263 = vmatprep.subr.mxu0 0.0
        %264 = vmatpush2.msra.mxu0 0.0
        %265 = vmatprep.subr.mxu0 0.0
        %266 = vmatpush2.msra.mxu0 0.0
        %267 = vmatprep.subr.mxu0 0.0
        %268 = vmatpush2.msra.mxu0 0.0
        %269 = vmatprep.subr.mxu0 0.0
        %270 = vmatpush2.msra.mxu0 0.0
        %271 = vmatprep.subr.mxu0 0.0
        %272 = vmatpush2.msra.mxu0 0.0
        %273 = vmatprep.subr.mxu0 0.0
        %274 = vmatpush2.msra.mxu0 0.0
        %275 = vmatprep.subr.mxu0 0.0
        %276 = vmatpush2.msra.mxu0 0.0
        %277 = vmatprep.subr.mxu0 0.0
        %278 = vmatpush2.msra.mxu0 0.0
        %279 = vmatprep.subr.mxu0 0.0
        %280 = vmatpush2.msra.mxu0 0.0
        %281 = vmatprep.mubr.f32.mxu0 0.0
        %282 = vmatmul.mubr.f32.gmra.mxu0 %v215
        %v283 = vpop.f32.mrf.mxu0
        %v284 = vadd.f32 %v211, %v283
        %v285 = vpop.f32.mrf.mxu0
        %286 = vdwg.mxu0
        %287 = vst [vmem:[%s200] sm:$0xff] %v284
        %p288 = scmp.lt.s32.totalorder %s18, 1
        %s289 = scalar_select %p288, %s18, 1
        %s290 = smul.addr %s289, 8
        %s291 = scalar_lea.vmem %s3, %s290
        // Predicated region
        $region41: #{classifier_head.1} parent=31 // pred_check
          %p292 = pneg %p104
        $region42: #{classifier_head.1} parent=31 // pred_check_branch
          %294 = sbr.rel (%p292) target = $region44
        $region43: #{classifier_head.1} parent=31 // pred_region
          _
        $region44: #{classifier_head.1} parent=31 // pred_fallthru
          _
      $region32: #{classifier_head.1} parent=5 // pred_fallthru
        _
      %p295 = scmp.le.s32.totalorder 2, %s13
      // Predicated region
      $region45: #{classifier_head.1} parent=5 // pred_check
        %p296 = pneg %p295
      $region46: #{classifier_head.1} parent=5 // pred_check_branch
        %298 = sbr.rel (%p296) target = $region48
      $region47: #{classifier_head.1} parent=5 // pred_region
        %s299 = ssub.s32 %s13, 2
        // Predicated region
        $region49: #{classifier_head.1} parent=47 // pred_check
          %p300 = pneg %p110
        $region50: #{classifier_head.1} parent=47 // pred_check_branch
          %302 = sbr.rel (%p300) target = $region52
        $region51: #{classifier_head.1} parent=47 // pred_region
          %p303 = scmp.lt.s32.totalorder %s19, 1
          %s304 = scalar_select %p303, %s19, 1
          %s305 = smul.addr %s304, 8
          %s306 = scalar_lea.vmem %s3, %s305
        $region52: #{classifier_head.1} parent=47 // pred_fallthru
          _
      $region48: #{classifier_head.1} parent=5 // pred_fallthru
        _
    $region6: #{classifier_head.1} parent=1 // loop_footer
      %s17 = sadd.s32 1, %s13
    $region7: #{classifier_head.1} parent=1 // loop_footer_branch
      %12 = sbr.rel target = $region3
    $region8: #{classifier_head.1} parent=1 // loop_exit
      _
    %307 = vsyncpa [#allocation3], 1
    %s308 = scalar_lea.sflag [#allocation3], 1
    %309 = vsyncpa %s308, 1
    %310 = vsyncpa [#allocation5], 1

</llo_original>
